<compile_context>
chip_gen: v5e
topology: v5e:2x2
jax: 0.10.0
libtpu: 0.0.40
codegen_flags: <defaults>
</compile_context>

<pallas_src>
import functools

import jax
import jax.numpy as jnp
from jax.experimental import pallas as pl
from jax.experimental.pallas import tpu as pltpu

_NEG_LOG_1E4 = 9.210340371976184  # = -log(1e-4)


def _rce_kernel(pred_ref, labels_ref, out_ref, *, n_valid, block_n, scale, mask_tail):
    i = pl.program_id(0)

    @pl.when(i == 0)
    def _init():
        out_ref[...] = jnp.zeros_like(out_ref)

    # (C, TN) block: classes on sublanes, batch samples on lanes (lane-dense).
    x = pred_ref[...].astype(jnp.float32)

    # Softmax over classes: one exp pass, reused for the probabilities.
    m = jnp.max(x, axis=0, keepdims=True)                   # (1, TN)
    e = jnp.exp(x - m)                                      # (C, TN)  single EUP pass
    s = jnp.sum(e, axis=0, keepdims=True)                   # (1, TN)
    p = e * pl.reciprocal(s, approx=True)                   # softmax probs
    p = jnp.clip(p, 1e-7, 1.0)                              # torch.clamp(min=1e-7, max=1)

    # Closed-form reverse cross entropy (no one-hot tensor, no (C,TN) log()):
    #   rce_i = -log(1e-4) * (sum_c p_ic - p_i,label)
    labels = labels_ref[...]                                # (1, TN) int32, lane-dense
    cls = jax.lax.broadcasted_iota(jnp.int32, x.shape, 0)   # class id per sublane
    p_lab = jnp.sum(jnp.where(cls == labels, p, 0.0), axis=0, keepdims=True)
    p_sum = jnp.sum(p, axis=0, keepdims=True)
    rce = _NEG_LOG_1E4 * (p_sum - p_lab)                    # (1, TN) per-sample loss

    if mask_tail:
        # Zero out batch-padding columns (only traced in when padding exists).
        col = i * block_n + jax.lax.broadcasted_iota(jnp.int32, rce.shape, 1)
        rce = jnp.where(col < n_valid, rce, 0.0)

    out_ref[...] += jnp.sum(rce, axis=1, keepdims=True)     # accumulate partial sum

    @pl.when(i == pl.num_programs(0) - 1)
    def _finalize():
        out_ref[...] = out_ref[...] * jnp.float32(scale / n_valid)


def _round_up(x, m):
    return ((x + m - 1) // m) * m


def _choose_block(N, C, itemsize, target_block_bytes):
    """Pick a lane-dense batch-block width TN and padded batch size N_pad."""
    n_pad128 = _round_up(N, 128)
    tn_target = max(128, ((target_block_bytes // max(C * itemsize, 1)) // 128) * 128)
    if n_pad128 <= tn_target:
        return n_pad128, n_pad128
    # Balance block sizes so the last block is not mostly padding.
    g = pl.cdiv(n_pad128, tn_target)
    tn = _round_up(pl.cdiv(n_pad128, g), 128)
    return tn, tn * g


def reverse_cross_entropy(pred, labels, *, scale=1.0, target_block_bytes=2 << 20):
    """ReverseCrossEntropy(num_classes, scale).forward(pred, labels).

    pred:   [N, C] logits (any float dtype; read natively, upcast in-kernel)
    labels: [N] integer class ids
    returns scalar float32 loss.
    """
    N, C = pred.shape
    itemsize = jnp.dtype(pred.dtype).itemsize
    TN, N_pad = _choose_block(N, C, itemsize, int(target_block_bytes))

    # Batch-on-lanes layout (C << 128).  For a large C that is a multiple of 128,
    # the [N, C] layout with C-tiling would be preferred instead.
    pred_t = pred.T                                         # (C, N), native dtype
    labels_i = labels.astype(jnp.int32)
    if N_pad != N:
        pred_t = jnp.pad(pred_t, ((0, 0), (0, N_pad - N)))
        labels_i = jnp.pad(labels_i, (0, N_pad - N))
    labels2d = labels_i.reshape(1, N_pad)

    grid = (N_pad // TN,)
    kernel = functools.partial(
        _rce_kernel,
        n_valid=N,
        block_n=TN,
        scale=float(scale),
        mask_tail=(N_pad != N),
    )
    out = pl.pallas_call(
        kernel,
        out_shape=jax.ShapeDtypeStruct((1, 1), jnp.float32),
        grid_spec=pltpu.PrefetchScalarGridSpec(
            num_scalar_prefetch=0,
            grid=grid,
            in_specs=[
                pl.BlockSpec((C, TN), lambda i: (0, i)),    # logits, classes x batch
                pl.BlockSpec((1, TN), lambda i: (0, i)),    # labels, lane-dense int32
            ],
            out_specs=pl.BlockSpec((1, 1), lambda i: (0, 0)),  # resident accumulator
        ),
        compiler_params=pltpu.CompilerParams(
            dimension_semantics=("arbitrary",),
        ),
    )(pred_t, labels2d)
    return out[0, 0]


def _reference(pred, labels, num_classes, scale):
    # Pure-JAX mirror of the PyTorch forward.
    p = jax.nn.softmax(pred.astype(jnp.float32), axis=1)
    p = jnp.clip(p, 1e-7, 1.0)
    oh = jax.nn.one_hot(labels, num_classes, dtype=jnp.float32)
    oh = jnp.clip(oh, 1e-4, 1.0)
    rce = -jnp.sum(p * jnp.log(oh), axis=1)
    return scale * jnp.mean(rce)


if __name__ == "__main__":
    key = jax.random.PRNGKey(0)
    k1, k2 = jax.random.split(key)

    N, num_classes, scale = 8, 10, 1.0
    pred = jax.random.normal(k1, (N, num_classes), dtype=jnp.float32)
    labels = jax.random.randint(k2, (N,), 0, num_classes, dtype=jnp.int32)

    loss = reverse_cross_entropy(pred, labels, scale=scale)
    loss = jax.block_until_ready(loss)

    ref = _reference(pred, labels, num_classes, scale)
    # approx reciprocal in the softmax denominator -> slightly looser tolerance
    assert jnp.allclose(loss, ref, rtol=5e-3, atol=5e-3), (loss, ref)

    print("KERNEL_OK")
</pallas_src>

<mosaic_0001>
module attributes {stable_mosaic.version = 11 : i64} {
  func.func @_rce_kernel(%arg0: i32, %arg1: memref<10x128xf32, #tpu.memory_space<vmem>>, %arg2: memref<1x128xi32, #tpu.memory_space<vmem>>, %arg3: memref<1x1xf32, #tpu.memory_space<vmem>>) attributes {dimension_semantics = [#tpu.dimension_semantics<arbitrary>], iteration_bounds = array<i64: 1>, scalar_prefetch = 0 : i64, scratch_operands = 0 : i64, tpu.core_type = #tpu.core_type<tc>, window_params = [{transform_indices = @transform_0, window_bounds = array<i64: 10, 128>}, {transform_indices = @transform_1, window_bounds = array<i64: 1, 128>}, {pipeline_mode = #tpu.pipeline_mode<synchronous>, transform_indices = @transform_2, window_bounds = array<i64: 1, 1>}]} {
    %c0_i32 = arith.constant 0 : i32
    %0 = arith.cmpi eq, %arg0, %c0_i32 : i32
    %1 = arith.extui %0 : i1 to i32
    %c0_i32_0 = arith.constant 0 : i32
    %2 = arith.cmpi ne, %1, %c0_i32_0 : i32
    scf.if %2 {
      %cst_19 = arith.constant 0.000000e+00 : f32
      %47 = vector.broadcast %cst_19 : f32 to vector<1x1xf32>
      %c0_20 = arith.constant 0 : index
      %c0_21 = arith.constant 0 : index
      %48 = vector.load %arg3[%c0_20, %c0_21] : memref<1x1xf32, #tpu.memory_space<vmem>>, vector<1x1xf32>
      tpu.vector_store %arg3[%c0_20, %c0_21], %47 {strides = array<i32>} : memref<1x1xf32, #tpu.memory_space<vmem>>, vector<1x1xf32>,
    } else {
    }
    %c0 = arith.constant 0 : index
    %c0_1 = arith.constant 0 : index
    %3 = vector.load %arg1[%c0, %c0_1] : memref<10x128xf32, #tpu.memory_space<vmem>>, vector<10x128xf32>
    %cst = arith.constant dense<0xFF800000> : vector<128xf32>
    %4 = vector.multi_reduction <maximumf>, %3, %cst [0] : vector<10x128xf32> to vector<128xf32>
    %5 = vector.shape_cast %4 : vector<128xf32> to vector<1x128xf32>
    %6 = vector.broadcast %5 : vector<1x128xf32> to vector<10x128xf32>
    %7 = arith.subf %3, %6 : vector<10x128xf32>
    %8 = math.exp %7 : vector<10x128xf32>
    %cst_2 = arith.constant dense<0.000000e+00> : vector<128xf32>
    %9 = vector.multi_reduction <add>, %8, %cst_2 [0] : vector<10x128xf32> to vector<128xf32>
    %10 = vector.shape_cast %9 : vector<128xf32> to vector<1x128xf32>
    %11 = tpu.reciprocal %10 {approx = true} : vector<1x128xf32> -> vector<1x128xf32>
    %12 = vector.broadcast %11 : vector<1x128xf32> to vector<10x128xf32>
    %13 = arith.mulf %8, %12 : vector<10x128xf32>
    %cst_3 = arith.constant 1.000000e-07 : f32
    %cst_4 = arith.constant 1.000000e+00 : f32
    %14 = vector.broadcast %cst_3 : f32 to vector<10x128xf32>
    %15 = arith.maximumf %14, %13 : vector<10x128xf32>
    %16 = vector.broadcast %cst_4 : f32 to vector<10x128xf32>
    %17 = arith.minimumf %16, %15 : vector<10x128xf32>
    %c0_5 = arith.constant 0 : index
    %c0_6 = arith.constant 0 : index
    %18 = vector.load %arg2[%c0_5, %c0_6] : memref<1x128xi32, #tpu.memory_space<vmem>>, vector<1x128xi32>
    %19 = tpu.iota {dimensions = array<i32: 0>} : vector<10x128xi32>
    %20 = vector.broadcast %18 : vector<1x128xi32> to vector<10x128xi32>
    %21 = arith.cmpi eq, %19, %20 : vector<10x128xi32>
    %cst_7 = arith.constant 0.000000e+00 : f32
    %22 = vector.broadcast %cst_7 : f32 to vector<10x128xf32>
    %23 = arith.select %21, %17, %22 : vector<10x128xi1>, vector<10x128xf32>
    %cst_8 = arith.constant dense<0.000000e+00> : vector<128xf32>
    %24 = vector.multi_reduction <add>, %23, %cst_8 [0] : vector<10x128xf32> to vector<128xf32>
    %25 = vector.shape_cast %24 : vector<128xf32> to vector<1x128xf32>
    %cst_9 = arith.constant dense<0.000000e+00> : vector<128xf32>
    %26 = vector.multi_reduction <add>, %17, %cst_9 [0] : vector<10x128xf32> to vector<128xf32>
    %27 = vector.shape_cast %26 : vector<128xf32> to vector<1x128xf32>
    %28 = arith.subf %27, %25 : vector<1x128xf32>
    %cst_10 = arith.constant 9.21034049 : f32
    %29 = vector.broadcast %cst_10 : f32 to vector<1x128xf32>
    %30 = arith.mulf %29, %28 : vector<1x128xf32>
    %c128_i32 = arith.constant 128 : i32
    %31 = arith.muli %arg0, %c128_i32 : i32
    %32 = tpu.iota {dimensions = array<i32: 1>} : vector<1x128xi32>
    %33 = vector.broadcast %31 : i32 to vector<1x128xi32>
    %34 = arith.addi %33, %32 : vector<1x128xi32>
    %c8_i32 = arith.constant 8 : i32
    %35 = vector.broadcast %c8_i32 : i32 to vector<1x128xi32>
    %36 = arith.cmpi slt, %34, %35 : vector<1x128xi32>
    %cst_11 = arith.constant 0.000000e+00 : f32
    %37 = vector.broadcast %cst_11 : f32 to vector<1x128xf32>
    %38 = arith.select %36, %30, %37 : vector<1x128xi1>, vector<1x128xf32>
    %c0_12 = arith.constant 0 : index
    %c0_13 = arith.constant 0 : index
    %39 = vector.load %arg3[%c0_12, %c0_13] : memref<1x1xf32, #tpu.memory_space<vmem>>, vector<1x1xf32>
    %cst_14 = arith.constant dense<0.000000e+00> : vector<1xf32>
    %40 = vector.multi_reduction <add>, %38, %cst_14 [1] : vector<1x128xf32> to vector<1xf32>
    %41 = vector.shape_cast %40 : vector<1xf32> to vector<1x1xf32>
    %42 = arith.addf %39, %41 : vector<1x1xf32>
    %c0_15 = arith.constant 0 : index
    %c0_16 = arith.constant 0 : index
    %43 = vector.load %arg3[%c0_15, %c0_16] : memref<1x1xf32, #tpu.memory_space<vmem>>, vector<1x1xf32>
    tpu.vector_store %arg3[%c0_15, %c0_16], %42 {strides = array<i32>} : memref<1x1xf32, #tpu.memory_space<vmem>>, vector<1x1xf32>,
    %c0_i32_17 = arith.constant 0 : i32
    %44 = arith.cmpi eq, %arg0, %c0_i32_17 : i32
    %45 = arith.extui %44 : i1 to i32
    %c0_i32_18 = arith.constant 0 : i32
    %46 = arith.cmpi ne, %45, %c0_i32_18 : i32
    scf.if %46 {
      %c0_19 = arith.constant 0 : index
      %c0_20 = arith.constant 0 : index
      %47 = vector.load %arg3[%c0_19, %c0_20] : memref<1x1xf32, #tpu.memory_space<vmem>>, vector<1x1xf32>
      %cst_21 = arith.constant 1.250000e-01 : f32
      %48 = vector.broadcast %cst_21 : f32 to vector<1x1xf32>
      %49 = arith.mulf %47, %48 : vector<1x1xf32>
      %c0_22 = arith.constant 0 : index
      %c0_23 = arith.constant 0 : index
      %50 = vector.load %arg3[%c0_22, %c0_23] : memref<1x1xf32, #tpu.memory_space<vmem>>, vector<1x1xf32>
      tpu.vector_store %arg3[%c0_22, %c0_23], %49 {strides = array<i32>} : memref<1x1xf32, #tpu.memory_space<vmem>>, vector<1x1xf32>,
    } else {
    }
    return
  }
  func.func @transform_0(%arg0: i32) -> (i32, i32) {
    %c0_i32 = arith.constant 0 : i32
    %c0_i32_0 = arith.constant 0 : i32
    return %c0_i32, %arg0 : i32, i32
  }
  func.func @transform_1(%arg0: i32) -> (i32, i32) {
    %c0_i32 = arith.constant 0 : i32
    %c0_i32_0 = arith.constant 0 : i32
    return %c0_i32, %arg0 : i32, i32
  }
  func.func @transform_2(%arg0: i32) -> (i32, i32) {
    %c0_i32 = arith.constant 0 : i32
    %c0_i32_0 = arith.constant 0 : i32
    %c0_i32_1 = arith.constant 0 : i32
    return %c0_i32, %c0_i32_0 : i32, i32
  }
}

</mosaic_0001>

<llo_original>
// kernel: tpu_custom_call.1
$region0: #{tpu_custom_call.1}
  #allocation0 [shape = 'u32[]', space=smem, size = 0x4, offset = 0x4, fixed_abs, tag = 'smem constant byte address 0x4 - core index']
  #allocation1 [shape = 'u32[72,128]{1,0:T(1,128)}', space=vmem, size = 0x9000, scoped, tag = 'internal scratch']
  %s0 = inlined_call_operand.hbm [shape: f32[10,128], index: 0, kind: input, shape index: {}]
  %s1 = inlined_call_operand.hbm [shape: s32[1,128], index: 1, kind: input, shape index: {}]
  %s2 = inlined_call_operand.hbm [shape: f32[1,1], index: 2, kind: output, shape index: {}]
  %s3 = sld [smem:[#allocation0]]
  $region34: #{tpu_custom_call.1} parent=0
    _
  %s5 = ssub.s32 1, %s3
  %s6 = scalar_select 0, %s5, %s3
  $region1: #{tpu_custom_call.1} parent=0
    #allocation2 [shape = 'u8[8192]{0}', space=vmem, size = 0x2000, scoped, tag = 'input window, operand 0, single buffered']
    #allocation3 [shape = 's32[1]{0}', space=sflag, size = 0x4, scoped, tag = 'scoped memory for tpu_custom_call.1']
    #allocation4 [shape = 's32[1]{0}', space=sflag, size = 0x4, scoped, tag = 'scoped memory for tpu_custom_call.1']
    #allocation5 [shape = 'u8[512]{0}', space=vmem, size = 0x400, scoped, tag = 'input window, operand 1, single buffered']
    #allocation6 [shape = 's32[1]{0}', space=sflag, size = 0x4, scoped, tag = 'scoped memory for tpu_custom_call.1']
    #allocation7 [shape = 'u8[512]{0}', space=vmem, size = 0x400, scoped, tag = 'output window, operand 0, single buffered']
    %7 = vsyncpa [#allocation3], 0
    %8 = vsyncpa [#allocation6], 0
    %9 = vsyncpa [#allocation4], 0
    // Predicated region
    $region2: #{tpu_custom_call.1} parent=1 // pred_check
      _
    $region3: #{tpu_custom_call.1} parent=1 // pred_check_branch
      %11 = sbr.rel (0) target = $region5
    $region4: #{tpu_custom_call.1} parent=1 // pred_region
      %13 = vsyncadd [#allocation3], 0
      %s14 = sshll.u32 %s0, 4
      %s15 = int_to_ptr.hbm [resolvable:$true] %s14
      %s16 = sshll.u32 [#allocation2], 4
      %s17 = int_to_ptr.vmem [resolvable:$true] %s16
      %22 = dma.hbm_to_vmem [thread:$0]  %s15, 256, %s17, [#allocation3], 128, 128, 8
    $region5: #{tpu_custom_call.1} parent=1 // pred_fallthru
      _
    // Predicated region
    $region6: #{tpu_custom_call.1} parent=1 // pred_check
      _
    $region7: #{tpu_custom_call.1} parent=1 // pred_check_branch
      %24 = sbr.rel (0) target = $region9
    $region8: #{tpu_custom_call.1} parent=1 // pred_region
      %26 = vsyncadd [#allocation6], 0
      %s28 = sshll.u32 %s1, 4
      %s29 = int_to_ptr.hbm [resolvable:$true] %s28
      %s30 = sshll.u32 [#allocation5], 4
      %s31 = int_to_ptr.vmem [resolvable:$true] %s30
      %33 = dma.hbm_to_vmem [thread:$0]  %s29, 16, %s31, [#allocation6]
    $region9: #{tpu_custom_call.1} parent=1 // pred_fallthru
      _
    // Predicated region
    $region10: #{tpu_custom_call.1} parent=1 // pred_check
      _
    $region11: #{tpu_custom_call.1} parent=1 // pred_check_branch
      %35 = sbr.rel (0) target = $region13
    $region12: #{tpu_custom_call.1} parent=1 // pred_region
      %37 = dma.done [#allocation3], 256
    $region13: #{tpu_custom_call.1} parent=1 // pred_fallthru
      _
    // Predicated region
    $region14: #{tpu_custom_call.1} parent=1 // pred_check
      _
    $region15: #{tpu_custom_call.1} parent=1 // pred_check_branch
      %39 = sbr.rel (0) target = $region17
    $region16: #{tpu_custom_call.1} parent=1 // pred_region
      %41 = dma.done [#allocation6], 16
    $region17: #{tpu_custom_call.1} parent=1 // pred_fallthru
      _
    %p42 = scmp.eq.s32.totalorder 0, 0
    // Predicated region
    $region18: #{tpu_custom_call.1} parent=1 // pred_check
      %p43 = pneg %p42
    $region19: #{tpu_custom_call.1} parent=1 // pred_check_branch
      %45 = sbr.rel (%p43) target = $region21
    $region20: #{tpu_custom_call.1} parent=1 // pred_region
      %vm46 = vcmask 0
      %47 = vst.msk [vmem:[#allocation7] sm:$0x1] %vm46, 0.0
    $region21: #{tpu_custom_call.1} parent=1 // pred_fallthru
      _
    %v48 = vld [vmem:[#allocation2] sm:$0xff]
    %v49 = vld [vmem:[#allocation2 + $0x8] sm:$0x3]
    %vm50 = vcmask 1041408
    %v51 = vsel %vm50, %v49, -inf
    %v52 = vmax.f32 %v48, %v51
    %v53 = vrot.slane %v52, 4
    %v54 = vmax.f32 %v52, %v53
    %v55 = vrot.slane %v54, 2
    %v56 = vmax.f32 %v54, %v55
    %v57 = vrot.slane %v56, 1
    %v58 = vmax.f32 %v56, %v57
    %v59 = vsub.f32 %v48, %v58
    %v60 = vsub.f32 %v49, %v58
    %v61 = vmul.f32 %v59, 1.442695
    %v62 = vpow.pop %v61
    %v63 = vmul.f32 %v60, 1.442695
    %v64 = vpow.pop %v63
    %v65 = vsel %vm50, %v64, 0.0
    %v66 = vadd.f32 %v62, %v65
    %v67 = vrot.slane %v66, 4
    %v68 = vadd.f32 %v66, %v67
    %v69 = vrot.slane %v68, 2
    %v70 = vadd.f32 %v68, %v69
    %v71 = vrot.slane %v70, 1
    %v72 = vadd.f32 %v70, %v71
    %v73 = vrcp.pop %v72
    %v74 = vmul.f32 %v62, %v73
    %v75 = vmul.f32 %v64, %v73
    %v76 = vmax.f32 %v74, 1e-07
    %v77 = vmax.f32 %v75, 1e-07
    %v78 = vmin.f32 %v76, 1.0
    %v79 = vmin.f32 %v77, 1.0
    %v80 = vld [vmem:[#allocation5] sm:$0x1]
    %v81 = vlaneseq
    %v82 = vshrl.u32 %v81, 7
    %v83 = vadd.s32 %v82, 8
    %v84 = vperm.slane %v80, 0
    %vm85 = vcmp.eq.s32.totalorder %v82, %v84
    %vm86 = vcmp.eq.s32.totalorder %v83, %v84
    %v87 = vsel %vm85, %v78, 0.0
    %v88 = vsel %vm86, %v79, 0.0
    %v89 = vsel %vm50, %v88, 0.0
    %v90 = vadd.f32 %v87, %v89
    %v91 = vrot.slane %v90, 4
    %v92 = vadd.f32 %v90, %v91
    %v93 = vrot.slane %v92, 2
    %v94 = vadd.f32 %v92, %v93
    %v95 = vrot.slane %v94, 1
    %v96 = vadd.f32 %v94, %v95
    %v97 = vsel %vm50, %v79, 0.0
    %v98 = vadd.f32 %v78, %v97
    %v99 = vrot.slane %v98, 4
    %v100 = vadd.f32 %v98, %v99
    %v101 = vrot.slane %v100, 2
    %v102 = vadd.f32 %v100, %v101
    %v103 = vrot.slane %v102, 1
    %v104 = vadd.f32 %v102, %v103
    %v105 = vsub.f32 %v104, %v96
    %v106 = vmul.f32 %v105, 9.2103405
    %s107 = smul.u32 0, 128
    %v108 = vlaneseq
    %v109 = vand.u32 %v108, 127
    %v110 = vstv %s107
    %v111 = vadd.s32 %v110, %v109
    %vm112 = vcmp.lt.s32.totalorder %v111, 8
    %v113 = vsel %vm112, %v106, 0.0
    %v114 = vld [vmem:[#allocation7] sm:$0x1]
    %115 = vadd.xlane.f32.xlu0 %v113
    %v116 = vpop.xlane.xlu0 %115
    %v117 = vadd.f32 %v114, %v116
    %vm118 = vcmask 0
    %119 = vst.msk [vmem:[#allocation7] sm:$0x1] %vm118, %v117
    // Predicated region
    $region22: #{tpu_custom_call.1} parent=1 // pred_check
      %p120 = pneg %p42
    $region23: #{tpu_custom_call.1} parent=1 // pred_check_branch
      %122 = sbr.rel (%p120) target = $region25
    $region24: #{tpu_custom_call.1} parent=1 // pred_region
      %v123 = vld [vmem:[#allocation7] sm:$0x1]
      %v124 = vmul.f32 %v123, 0.125
      %125 = vst.msk [vmem:[#allocation7] sm:$0x1] %vm118, %v124
    $region25: #{tpu_custom_call.1} parent=1 // pred_fallthru
      _
    // Predicated region
    $region26: #{tpu_custom_call.1} parent=1 // pred_check
      _
    $region27: #{tpu_custom_call.1} parent=1 // pred_check_branch
      %127 = sbr.rel (0) target = $region29
    $region28: #{tpu_custom_call.1} parent=1 // pred_region
      %129 = vsyncadd [#allocation4], 0
      %s131 = sshll.u32 [#allocation7], 4
      %s132 = int_to_ptr.vmem [resolvable:$true] %s131
      %s133 = sshll.u32 %s2, 4
      %s134 = int_to_ptr.hbm [resolvable:$true] %s133
      %136 = dma.vmem_to_hbm [thread:$0]  %s132, 16, %s134, [#allocation4]
    $region29: #{tpu_custom_call.1} parent=1 // pred_fallthru
      _
    // Predicated region
    $region30: #{tpu_custom_call.1} parent=1 // pred_check
      _
    $region31: #{tpu_custom_call.1} parent=1 // pred_check_branch
      %138 = sbr.rel (0) target = $region33
    $region32: #{tpu_custom_call.1} parent=1 // pred_region
      %140 = dma.done [#allocation4], 16
    $region33: #{tpu_custom_call.1} parent=1 // pred_fallthru
      _
    %141 = vsyncpa [#allocation3], 1
    %142 = vsyncpa [#allocation6], 1
    %143 = vsyncpa [#allocation4], 1

</llo_original>
